<compile_context>
chip_gen: v5e
topology: v5e:2x2
jax: 0.10.0
libtpu: 0.0.40
codegen_flags: <defaults>
</compile_context>

<pallas_src>
import jax
import jax.numpy as jnp
from jax.experimental import pallas as pl
from jax.experimental.pallas import tpu as pltpu

# ----------------------------- problem sizes --------------------------------
M_MODELS = 3          # number of ensemble members
B = 8                 # batch
D = 32                # input feature dim
H = 64                # hidden dim
O = 8                 # output dim (number of predicted metrics)
O3 = 3 * O            # 24: fused per-model head width (pred | unc | em)
MH = M_MODELS * H     # 192: fused first-layer width (all models side by side)

# Packed-parameter slab layout (single f32 array, lane width MH=192, rows
# padded to multiples of 8 so every static slice is sublane-tile aligned).
ROW_W1 = 0                    # rows [0, D)          : W1_all   (D, M*H)
ROW_B1 = D                    # row  D (=32)         : b1_all   (1, M*H)
ROW_W2 = 40                   # rows [40, 40+MH)     : block-diag head weights
                              #   model m occupies rows 40+m*H .. 40+(m+1)*H,
                              #   lanes m*O3 .. (m+1)*O3 = [wp*ew | wu | we]
ROW_BH = ROW_W2 + MH          # row  232             : head biases in lanes [0, M*O3)
SLAB_ROWS = ROW_BH + 8        # 240


# ------------------------------- kernel -------------------------------------
def ensemble_kernel(x_ref,      # VMEM: (B, D)
                    slab_ref,   # VMEM: (SLAB_ROWS, MH) packed parameters
                    out_ref):   # VMEM: (B, O3) fused output [pred | unc | em]
    x = x_ref[...]                                        # (B, D)

    # Static (free) slices of the single parameter slab.
    w1 = slab_ref[ROW_W1:ROW_W1 + D, :]                   # (D, M*H)
    b1 = slab_ref[ROW_B1:ROW_B1 + 1, :]                   # (1, M*H)
    w2 = slab_ref[ROW_W2:ROW_W2 + MH, :]                  # (M*H, M*H), block-diag in lanes [0, M*O3)
    bh = slab_ref[ROW_BH:ROW_BH + 1, :]                   # (1, M*H)

    # First layer for ALL models in one MXU push.
    h = jnp.maximum(jnp.dot(x, w1, preferred_element_type=jnp.float32) + b1, 0.0)  # (B, M*H)

    # All 3*M head projections in one block-diagonal MXU push.
    # y[:, m*O3:(m+1)*O3] = h_m @ [wp_m*ew_m | wu_m | we_m] + [bp_m*ew_m | bu_m | be_m]
    y = jnp.dot(h, w2, preferred_element_type=jnp.float32) + bh                    # (B, M*H)

    # Column-type masks over the M stacked 24-lane slabs (lanes >= M*O3 unused).
    col = jax.lax.broadcasted_iota(jnp.int32, y.shape, 1)
    is_pred = jnp.zeros(y.shape, jnp.bool_)
    is_unc = jnp.zeros(y.shape, jnp.bool_)
    for m in range(M_MODELS):
        base = m * O3
        is_pred = jnp.logical_or(
            is_pred, jnp.logical_and(col >= base, col < base + O))
        is_unc = jnp.logical_or(
            is_unc, jnp.logical_and(col >= base + O, col < base + 2 * O))

    # One shared exp for both activations (stable, no inf intermediates).
    e = jnp.exp(-jnp.abs(y))                              # EUP
    sp = jnp.maximum(y, 0.0) + jnp.log1p(e)               # softplus
    inv = pl.reciprocal(1.0 + e, approx=True)             # EUP approximate reciprocal
    sg = jnp.where(y >= 0.0, inv, e * inv)                # sigmoid
    z = jnp.where(is_pred, y, jnp.where(is_unc, sp, sg))  # (B, M*H)

    # Cross-model reduction of the M per-model 24-lane slabs (XLU lane work).
    acc = z[:, 0:O3]
    for m in range(1, M_MODELS):
        acc = acc + z[:, m * O3:(m + 1) * O3]             # (B, O3)

    # pred columns already carry the ensemble weights (folded into W2/bh at
    # pack time); unc/em columns become means over models.
    col24 = jax.lax.broadcasted_iota(jnp.int32, (B, O3), 1)
    out_ref[...] = jnp.where(col24 < O, acc, acc * jnp.float32(1.0 / M_MODELS))


# --------------------------- one-time param packing ---------------------------
def pack_params(params, ensemble_weights):
    """Setup-time packing: fold ensemble weights into the prediction head and
    lay every parameter out in one lane-dense slab.  NOT in the per-call path;
    re-run only when params or ensemble_weights change."""
    ew = ensemble_weights.reshape(M_MODELS, 1, 1).astype(jnp.float32)
    whead = jnp.concatenate(
        [params["wp"] * ew, params["wu"], params["we"]], axis=-1)   # (M, H, 3*O)
    bhead = jnp.concatenate(
        [params["bp"] * ew, params["bu"], params["be"]], axis=-1)   # (M, 1, 3*O)

    w1_all = jnp.concatenate(
        [params["w1"][m] for m in range(M_MODELS)], axis=-1)        # (D, M*H)
    b1_all = jnp.concatenate(
        [params["b1"][m] for m in range(M_MODELS)], axis=-1)        # (1, M*H)

    slab = jnp.zeros((SLAB_ROWS, MH), jnp.float32)
    slab = slab.at[ROW_W1:ROW_W1 + D, :].set(w1_all.astype(jnp.float32))
    slab = slab.at[ROW_B1, :].set(b1_all[0].astype(jnp.float32))
    for m in range(M_MODELS):
        slab = slab.at[ROW_W2 + m * H:ROW_W2 + (m + 1) * H,
                       m * O3:(m + 1) * O3].set(whead[m])
        slab = slab.at[ROW_BH, m * O3:(m + 1) * O3].set(bhead[m, 0])
    return slab


# ------------------------------- wrapper -------------------------------------
@jax.jit
def ensemble_forward(x, slab):
    """x: (B, D) f32.  slab: pre-packed (SLAB_ROWS, MH) parameter slab."""
    vmem = pl.BlockSpec(memory_space=pltpu.MemorySpace.VMEM)
    out = pl.pallas_call(
        ensemble_kernel,
        out_shape=jax.ShapeDtypeStruct((B, O3), jnp.float32),
        in_specs=[vmem, vmem],
        out_specs=vmem,
    )(x, slab)
    return {
        "predictions": out[:, :O],
        "uncertainties": out[:, O:2 * O],
        "emergence_scores": out[:, 2 * O:],
    }


# ------------------------------ reference ------------------------------------
def ensemble_reference(x, params, ensemble_weights):
    preds, uncs, ems = [], [], []
    for m in range(M_MODELS):
        h = jnp.maximum(x @ params["w1"][m] + params["b1"][m], 0.0)
        preds.append(h @ params["wp"][m] + params["bp"][m])
        uncs.append(jax.nn.softplus(h @ params["wu"][m] + params["bu"][m]))
        ems.append(jax.nn.sigmoid(h @ params["we"][m] + params["be"][m]))
    preds = jnp.stack(preds)
    uncs = jnp.stack(uncs)
    ems = jnp.stack(ems)
    wp = jnp.sum(preds * ensemble_weights.reshape(-1, 1, 1), axis=0)
    return {"predictions": wp,
            "uncertainties": jnp.mean(uncs, axis=0),
            "emergence_scores": jnp.mean(ems, axis=0)}


# --------------------------------- main --------------------------------------
if __name__ == "__main__":
    key = jax.random.PRNGKey(0)
    keys = jax.random.split(key, 10)

    x = jax.random.normal(keys[0], (B, D), dtype=jnp.float32)

    scale = 0.1
    params = {
        "w1": scale * jax.random.normal(keys[1], (M_MODELS, D, H), jnp.float32),
        "b1": scale * jax.random.normal(keys[2], (M_MODELS, 1, H), jnp.float32),
        "wp": scale * jax.random.normal(keys[3], (M_MODELS, H, O), jnp.float32),
        "bp": scale * jax.random.normal(keys[4], (M_MODELS, 1, O), jnp.float32),
        "wu": scale * jax.random.normal(keys[5], (M_MODELS, H, O), jnp.float32),
        "bu": scale * jax.random.normal(keys[6], (M_MODELS, 1, O), jnp.float32),
        "we": scale * jax.random.normal(keys[7], (M_MODELS, H, O), jnp.float32),
        "be": scale * jax.random.normal(keys[8], (M_MODELS, 1, O), jnp.float32),
    }
    # Non-uniform weights exercise the ensemble-weight folding (default in the
    # module is uniform ones/num_models; any normalized vector is valid).
    ensemble_weights = jnp.array([0.5, 0.3, 0.2], jnp.float32)

    # Setup-time packing (hoisted out of the per-call path).
    slab = jax.block_until_ready(pack_params(params, ensemble_weights))

    out = ensemble_forward(x, slab)
    out = jax.block_until_ready(out)

    ref = ensemble_reference(x, params, ensemble_weights)
    # Tolerance slightly looser than f32 exact to cover the approximate EUP
    # reciprocal used on the sigmoid path (outputs are O(0.1..1)).
    for k in ("predictions", "uncertainties", "emergence_scores"):
        assert out[k].shape == (B, O), (k, out[k].shape)
        assert jnp.allclose(out[k], ref[k], atol=2e-3, rtol=2e-3), k

    print("KERNEL_OK")
</pallas_src>

<mosaic_0001>
module attributes {stable_mosaic.version = 11 : i64} {
  func.func @ensemble_kernel(%arg0: memref<8x32xf32, #tpu.memory_space<vmem>>, %arg1: memref<240x192xf32, #tpu.memory_space<vmem>>, %arg2: memref<8x24xf32, #tpu.memory_space<vmem>>) attributes {dimension_semantics = [], scalar_prefetch = 0 : i64, scratch_operands = 0 : i64, tpu.core_type = #tpu.core_type<tc>} {
    %c0 = arith.constant 0 : index
    %c0_0 = arith.constant 0 : index
    %0 = vector.load %arg0[%c0, %c0_0] : memref<8x32xf32, #tpu.memory_space<vmem>>, vector<8x32xf32>
    %c0_1 = arith.constant 0 : index
    %c0_2 = arith.constant 0 : index
    %1 = vector.load %arg1[%c0_1, %c0_2] : memref<240x192xf32, #tpu.memory_space<vmem>>, vector<32x192xf32>
    %c32 = arith.constant 32 : index
    %c0_3 = arith.constant 0 : index
    %2 = vector.load %arg1[%c32, %c0_3] : memref<240x192xf32, #tpu.memory_space<vmem>>, vector<1x192xf32>
    %c40 = arith.constant 40 : index
    %c0_4 = arith.constant 0 : index
    %3 = vector.load %arg1[%c40, %c0_4] : memref<240x192xf32, #tpu.memory_space<vmem>>, vector<192x192xf32>
    %c232 = arith.constant 232 : index
    %c0_5 = arith.constant 0 : index
    %4 = vector.load %arg1[%c232, %c0_5] : memref<240x192xf32, #tpu.memory_space<vmem>>, vector<1x192xf32>
    %cst = arith.constant dense<0.000000e+00> : vector<8x192xf32>
    %5 = tpu.matmul %0, %1, %cst {dimension_numbers = #tpu.dot_dimension_numbers<[1], [0], [0], [1], [0, 0, 1, 1], [], []>} : vector<8x32xf32>, vector<32x192xf32>, vector<8x192xf32> -> vector<8x192xf32>
    %6 = vector.broadcast %2 : vector<1x192xf32> to vector<8x192xf32>
    %7 = arith.addf %5, %6 : vector<8x192xf32>
    %cst_6 = arith.constant 0.000000e+00 : f32
    %8 = vector.broadcast %cst_6 : f32 to vector<8x192xf32>
    %9 = arith.maximumf %7, %8 : vector<8x192xf32>
    %cst_7 = arith.constant dense<0.000000e+00> : vector<8x192xf32>
    %10 = tpu.matmul %9, %3, %cst_7 {dimension_numbers = #tpu.dot_dimension_numbers<[1], [0], [0], [1], [0, 0, 1, 1], [], []>} : vector<8x192xf32>, vector<192x192xf32>, vector<8x192xf32> -> vector<8x192xf32>
    %11 = vector.broadcast %4 : vector<1x192xf32> to vector<8x192xf32>
    %12 = arith.addf %10, %11 : vector<8x192xf32>
    %13 = tpu.iota {dimensions = array<i32: 1>} : vector<8x192xi32>
    %false = arith.constant false
    %14 = vector.broadcast %false : i1 to vector<8x192xi1>
    %false_8 = arith.constant false
    %15 = vector.broadcast %false_8 : i1 to vector<8x192xi1>
    %c0_i32 = arith.constant 0 : i32
    %16 = vector.broadcast %c0_i32 : i32 to vector<8x192xi32>
    %17 = arith.cmpi sge, %13, %16 : vector<8x192xi32>
    %c8_i32 = arith.constant 8 : i32
    %18 = vector.broadcast %c8_i32 : i32 to vector<8x192xi32>
    %19 = arith.cmpi slt, %13, %18 : vector<8x192xi32>
    %20 = arith.andi %17, %19 : vector<8x192xi1>
    %21 = arith.ori %14, %20 : vector<8x192xi1>
    %c8_i32_9 = arith.constant 8 : i32
    %22 = vector.broadcast %c8_i32_9 : i32 to vector<8x192xi32>
    %23 = arith.cmpi sge, %13, %22 : vector<8x192xi32>
    %c16_i32 = arith.constant 16 : i32
    %24 = vector.broadcast %c16_i32 : i32 to vector<8x192xi32>
    %25 = arith.cmpi slt, %13, %24 : vector<8x192xi32>
    %26 = arith.andi %23, %25 : vector<8x192xi1>
    %27 = arith.ori %15, %26 : vector<8x192xi1>
    %c24_i32 = arith.constant 24 : i32
    %28 = vector.broadcast %c24_i32 : i32 to vector<8x192xi32>
    %29 = arith.cmpi sge, %13, %28 : vector<8x192xi32>
    %c32_i32 = arith.constant 32 : i32
    %30 = vector.broadcast %c32_i32 : i32 to vector<8x192xi32>
    %31 = arith.cmpi slt, %13, %30 : vector<8x192xi32>
    %32 = arith.andi %29, %31 : vector<8x192xi1>
    %33 = arith.ori %21, %32 : vector<8x192xi1>
    %c32_i32_10 = arith.constant 32 : i32
    %34 = vector.broadcast %c32_i32_10 : i32 to vector<8x192xi32>
    %35 = arith.cmpi sge, %13, %34 : vector<8x192xi32>
    %c40_i32 = arith.constant 40 : i32
    %36 = vector.broadcast %c40_i32 : i32 to vector<8x192xi32>
    %37 = arith.cmpi slt, %13, %36 : vector<8x192xi32>
    %38 = arith.andi %35, %37 : vector<8x192xi1>
    %39 = arith.ori %27, %38 : vector<8x192xi1>
    %c48_i32 = arith.constant 48 : i32
    %40 = vector.broadcast %c48_i32 : i32 to vector<8x192xi32>
    %41 = arith.cmpi sge, %13, %40 : vector<8x192xi32>
    %c56_i32 = arith.constant 56 : i32
    %42 = vector.broadcast %c56_i32 : i32 to vector<8x192xi32>
    %43 = arith.cmpi slt, %13, %42 : vector<8x192xi32>
    %44 = arith.andi %41, %43 : vector<8x192xi1>
    %45 = arith.ori %33, %44 : vector<8x192xi1>
    %c56_i32_11 = arith.constant 56 : i32
    %46 = vector.broadcast %c56_i32_11 : i32 to vector<8x192xi32>
    %47 = arith.cmpi sge, %13, %46 : vector<8x192xi32>
    %c64_i32 = arith.constant 64 : i32
    %48 = vector.broadcast %c64_i32 : i32 to vector<8x192xi32>
    %49 = arith.cmpi slt, %13, %48 : vector<8x192xi32>
    %50 = arith.andi %47, %49 : vector<8x192xi1>
    %51 = arith.ori %39, %50 : vector<8x192xi1>
    %52 = math.absf %12 : vector<8x192xf32>
    %cst_12 = arith.constant 0.000000e+00 : f32
    %53 = vector.broadcast %cst_12 : f32 to vector<8x192xf32>
    %54 = arith.subf %53, %52 : vector<8x192xf32>
    %55 = math.exp %54 : vector<8x192xf32>
    %cst_13 = arith.constant 0.000000e+00 : f32
    %56 = vector.broadcast %cst_13 : f32 to vector<8x192xf32>
    %57 = arith.maximumf %12, %56 : vector<8x192xf32>
    %58 = math.log1p %55 : vector<8x192xf32>
    %59 = arith.addf %57, %58 : vector<8x192xf32>
    %cst_14 = arith.constant 1.000000e+00 : f32
    %60 = vector.broadcast %cst_14 : f32 to vector<8x192xf32>
    %61 = arith.addf %60, %55 : vector<8x192xf32>
    %62 = tpu.reciprocal %61 {approx = true} : vector<8x192xf32> -> vector<8x192xf32>
    %cst_15 = arith.constant 0.000000e+00 : f32
    %63 = vector.broadcast %cst_15 : f32 to vector<8x192xf32>
    %64 = arith.cmpf oge, %12, %63 : vector<8x192xf32>
    %65 = arith.mulf %55, %62 : vector<8x192xf32>
    %66 = arith.select %64, %62, %65 : vector<8x192xi1>, vector<8x192xf32>
    %67 = arith.select %51, %59, %66 : vector<8x192xi1>, vector<8x192xf32>
    %68 = arith.select %45, %12, %67 : vector<8x192xi1>, vector<8x192xf32>
    %69 = vector.extract_strided_slice %68 {offsets = [0, 0], sizes = [8, 24], strides = [1, 1]} : vector<8x192xf32> to vector<8x24xf32>
    %70 = vector.extract_strided_slice %68 {offsets = [0, 24], sizes = [8, 24], strides = [1, 1]} : vector<8x192xf32> to vector<8x24xf32>
    %71 = arith.addf %69, %70 : vector<8x24xf32>
    %72 = vector.extract_strided_slice %68 {offsets = [0, 48], sizes = [8, 24], strides = [1, 1]} : vector<8x192xf32> to vector<8x24xf32>
    %73 = arith.addf %71, %72 : vector<8x24xf32>
    %74 = tpu.iota {dimensions = array<i32: 1>} : vector<8x24xi32>
    %c8_i32_16 = arith.constant 8 : i32
    %75 = vector.broadcast %c8_i32_16 : i32 to vector<8x24xi32>
    %76 = arith.cmpi slt, %74, %75 : vector<8x24xi32>
    %cst_17 = arith.constant 0.333333343 : f32
    %77 = vector.broadcast %cst_17 : f32 to vector<8x24xf32>
    %78 = arith.mulf %73, %77 : vector<8x24xf32>
    %79 = arith.select %76, %73, %78 : vector<8x24xi1>, vector<8x24xf32>
    %c0_18 = arith.constant 0 : index
    %c0_19 = arith.constant 0 : index
    %80 = vector.load %arg2[%c0_18, %c0_19] : memref<8x24xf32, #tpu.memory_space<vmem>>, vector<8x24xf32>
    tpu.vector_store %arg2[%c0_18, %c0_19], %79 {strides = array<i32>} : memref<8x24xf32, #tpu.memory_space<vmem>>, vector<8x24xf32>,
    return
  }
}

</mosaic_0001>

<llo_original>
// kernel: ensemble_forward.1
$region0: #{ensemble_forward.1}
  #allocation0 [shape = 'u32[]', space=smem, size = 0x4, offset = 0x4, fixed_abs, tag = 'smem constant byte address 0x4 - core index']
  #allocation1 [shape = 'u32[72,128]{1,0:T(1,128)}', space=vmem, size = 0x9000, scoped, tag = 'internal scratch']
  %s0 = inlined_call_operand.vmem [shape: f32[8,32], index: 0, kind: input, shape index: {}]
  %s1 = inlined_call_operand.vmem [shape: f32[240,192], index: 1, kind: input, shape index: {}]
  %s2 = inlined_call_operand.vmem [shape: f32[8,24], index: 2, kind: output, shape index: {}]
  %s3 = sld [smem:[#allocation0]]
  $region18: #{ensemble_forward.1} parent=0
    _
  %s5 = ssub.s32 1, %s3
  %s6 = scalar_select 0, %s5, %s3
  // Predicated region
  $region2: #{ensemble_forward.1} parent=0 // pred_check
    _
  $region3: #{ensemble_forward.1} parent=0 // pred_check_branch
    %8 = sbr.rel (0) target = $region5
  $region4: #{ensemble_forward.1} parent=0 // pred_region
    _
  $region5: #{ensemble_forward.1} parent=0 // pred_fallthru
    _
  // Predicated region
  $region6: #{ensemble_forward.1} parent=0 // pred_check
    _
  $region7: #{ensemble_forward.1} parent=0 // pred_check_branch
    %10 = sbr.rel (0) target = $region9
  $region8: #{ensemble_forward.1} parent=0 // pred_region
    _
  $region9: #{ensemble_forward.1} parent=0 // pred_fallthru
    _
  %v11 = vld [vmem:[%s0] sm:$0xff]
  %v12 = vld [vmem:[%s1] sm:$0xff]
  %v13 = vld [vmem:[%s1 + $0x8] sm:$0xff]
  %v14 = vld [vmem:[%s1 + $0x10] sm:$0xff]
  %v15 = vld [vmem:[%s1 + $0x18] sm:$0xff]
  %v16 = vld [vmem:[%s1 + $0x20] sm:$0xff]
  %v17 = vld [vmem:[%s1 + $0x28] sm:$0xff]
  %v18 = vld [vmem:[%s1 + $0x30] sm:$0xff]
  %v19 = vld [vmem:[%s1 + $0x38] sm:$0xff]
  %s20 = scalar_lea.vmem %s1, 64
  %v21 = vld [vmem:[%s20] ss:$8 sm:$0x3]
  %v22 = vld [vmem:[%s1 + $0x50] sm:$0xff]
  %v23 = vld [vmem:[%s1 + $0x60] sm:$0xff]
  %v24 = vld [vmem:[%s1 + $0x70] sm:$0xff]
  %v25 = vld [vmem:[%s1 + $0x80] sm:$0xff]
  %v26 = vld [vmem:[%s1 + $0x90] sm:$0xff]
  %v27 = vld [vmem:[%s1 + $0xa0] sm:$0xff]
  %v28 = vld [vmem:[%s1 + $0xb0] sm:$0xff]
  %v29 = vld [vmem:[%s1 + $0xc0] sm:$0xff]
  %v30 = vld [vmem:[%s1 + $0xd0] sm:$0xff]
  %v31 = vld [vmem:[%s1 + $0xe0] sm:$0xff]
  %v32 = vld [vmem:[%s1 + $0xf0] sm:$0xff]
  %v33 = vld [vmem:[%s1 + $0x100] sm:$0xff]
  %v34 = vld [vmem:[%s1 + $0x110] sm:$0xff]
  %v35 = vld [vmem:[%s1 + $0x120] sm:$0xff]
  %v36 = vld [vmem:[%s1 + $0x130] sm:$0xff]
  %v37 = vld [vmem:[%s1 + $0x140] sm:$0xff]
  %v38 = vld [vmem:[%s1 + $0x150] sm:$0xff]
  %v39 = vld [vmem:[%s1 + $0x160] sm:$0xff]
  %v40 = vld [vmem:[%s1 + $0x170] sm:$0xff]
  %v41 = vld [vmem:[%s1 + $0x180] sm:$0xff]
  %v42 = vld [vmem:[%s1 + $0x190] sm:$0xff]
  %v43 = vld [vmem:[%s1 + $0x1a0] sm:$0xff]
  %v44 = vld [vmem:[%s1 + $0x1b0] sm:$0xff]
  %v45 = vld [vmem:[%s1 + $0x1c0] sm:$0xff]
  %s46 = scalar_lea.vmem %s1, 464
  %v47 = vld [vmem:[%s46] ss:$8 sm:$0x3]
  %v49 = vperm.slane %v21, 0
  %v50 = vperm.slane %v21, 1
  %vm53 = vcmask 261120
  %v55 = vsel %vm53, %v11, 0
  %57 = vmatpush.msra.mxu0 0.0
  %58 = vmatpush.msra.mxu0 0.0
  %59 = vmatpush.msra.mxu0 0.0
  %60 = vmatpush.msra.mxu0 0.0
  %61 = vmatpush.msra.mxu0 0.0
  %62 = vmatpush.msra.mxu0 0.0
  %63 = vmatpush.msra.mxu0 0.0
  %64 = vmatpush.msra.mxu0 0.0
  %65 = vmatpush.msra.mxu0 0.0
  %66 = vmatpush.msra.mxu0 0.0
  %67 = vmatpush.msra.mxu0 0.0
  %68 = vmatpush.msra.mxu0 0.0
  %69 = vmatpush.msra.mxu0 %v18
  %70 = vmatpush.msra.mxu0 %v16
  %71 = vmatpush.msra.mxu0 %v14
  %72 = vmatpush.msra.mxu0 %v12
  %73 = vmatmul.f32.gmra.mxu0 %v55
  %v74 = vpop.f32.mrf.mxu0
  %v75 = vadd.f32 %v49, %v74
  %76 = vdwg.mxu0
  %77 = vmatpush.msra.mxu0 0.0
  %78 = vmatpush.msra.mxu0 0.0
  %79 = vmatpush.msra.mxu0 0.0
  %80 = vmatpush.msra.mxu0 0.0
  %81 = vmatpush.msra.mxu0 0.0
  %82 = vmatpush.msra.mxu0 0.0
  %83 = vmatpush.msra.mxu0 0.0
  %84 = vmatpush.msra.mxu0 0.0
  %85 = vmatpush.msra.mxu0 0.0
  %86 = vmatpush.msra.mxu0 0.0
  %87 = vmatpush.msra.mxu0 0.0
  %88 = vmatpush.msra.mxu0 0.0
  %89 = vmatpush.msra.mxu0 %v19
  %90 = vmatpush.msra.mxu0 %v17
  %91 = vmatpush.msra.mxu0 %v15
  %92 = vmatpush.msra.mxu0 %v13
  %93 = vmatmul.f32.gmra.mxu0 %v55
  %v94 = vpop.f32.mrf.mxu0
  %v95 = vadd.f32 %v50, %v94
  %96 = vdwg.mxu0
  %v97 = vmax.f32 %v75, 0.0
  %v98 = vmax.f32 %v95, 0.0
  %v100 = vperm.slane %v47, 0
  %vm102 = vcmask 523264
  %v104 = vsel %vm102, %v98, 0
  %106 = vmatpush.msra.mxu0 %v37
  %107 = vmatpush.msra.mxu0 %v36
  %108 = vmatpush.msra.mxu0 %v35
  %109 = vmatpush.msra.mxu0 %v34
  %110 = vmatpush.msra.mxu0 %v33
  %111 = vmatpush.msra.mxu0 %v32
  %112 = vmatpush.msra.mxu0 %v31
  %113 = vmatpush.msra.mxu0 %v30
  %114 = vmatpush.msra.mxu0 %v29
  %115 = vmatpush.msra.mxu0 %v28
  %116 = vmatpush.msra.mxu0 %v27
  %117 = vmatpush.msra.mxu0 %v26
  %118 = vmatpush.msra.mxu0 %v25
  %119 = vmatpush.msra.mxu0 %v24
  %120 = vmatpush.msra.mxu0 %v23
  %121 = vmatpush.msra.mxu0 %v22
  %122 = vmatmul.f32.gmra.mxu0 %v97
  %v123 = vpop.f32.mrf.mxu0
  %v124 = vadd.f32 %v100, %v123
  %125 = vdwg.mxu0
  %126 = vmatpush.msra.mxu0 0.0
  %127 = vmatpush.msra.mxu0 0.0
  %128 = vmatpush.msra.mxu0 0.0
  %129 = vmatpush.msra.mxu0 0.0
  %130 = vmatpush.msra.mxu0 0.0
  %131 = vmatpush.msra.mxu0 0.0
  %132 = vmatpush.msra.mxu0 0.0
  %133 = vmatpush.msra.mxu0 0.0
  %134 = vmatpush.msra.mxu0 %v45
  %135 = vmatpush.msra.mxu0 %v44
  %136 = vmatpush.msra.mxu0 %v43
  %137 = vmatpush.msra.mxu0 %v42
  %138 = vmatpush.msra.mxu0 %v41
  %139 = vmatpush.msra.mxu0 %v40
  %140 = vmatpush.msra.mxu0 %v39
  %141 = vmatpush.msra.mxu0 %v38
  %142 = vmatmul.f32.gmra.mxu0 %v104
  %v143 = vpop.f32.mrf.mxu0
  %v144 = vadd.f32 %v124, %v143
  %145 = vdwg.mxu0
  %v146 = vlaneseq
  %v147 = vand.u32 %v146, 127
  %vm148 = vcmp.ge.s32.totalorder %v147, 0
  %vm149 = vcmp.lt.s32.totalorder %v147, 8
  %vm150 = vmand %vm148, %vm149
  %vm151 = vcmp.ge.s32.totalorder %v147, 8
  %vm152 = vcmp.lt.s32.totalorder %v147, 16
  %vm153 = vmand %vm151, %vm152
  %vm154 = vcmp.ge.s32.totalorder %v147, 24
  %vm155 = vcmp.lt.s32.totalorder %v147, 32
  %vm156 = vmand %vm154, %vm155
  %vm157 = vmor %vm150, %vm156
  %vm158 = vcmp.ge.s32.totalorder %v147, 32
  %vm159 = vcmp.lt.s32.totalorder %v147, 40
  %vm160 = vmand %vm158, %vm159
  %vm161 = vmor %vm153, %vm160
  %vm162 = vcmp.ge.s32.totalorder %v147, 48
  %vm163 = vcmp.lt.s32.totalorder %v147, 56
  %vm164 = vmand %vm162, %vm163
  %vm165 = vmor %vm157, %vm164
  %vm166 = vcmp.ge.s32.totalorder %v147, 56
  %vm167 = vcmp.lt.s32.totalorder %v147, 64
  %vm168 = vmand %vm166, %vm167
  %vm169 = vmor %vm161, %vm168
  %v170 = vand.u32 2147483647, %v144
  %v171 = vsub.f32 0.0, %v170
  %v172 = vmul.f32 %v171, 1.442695
  %v173 = vpow.pop %v172
  %v174 = vmax.f32 %v144, 0.0
  %v175 = vadd.f32 %v173, 1.0
  %v176 = vlog2.pop %v175
  %v177 = vmul.f32 %v176, 0.6931472
  %v178 = vmul.f32 -0.5, %v173
  %v179 = vadd.f32 %v178, 1.0
  %v180 = vmul.f32 %v179, %v173
  %v181 = vand.u32 2147483647, %v173
  %vm182 = vcmp.lt.f32.partialorder %v181, 0.0004427343
  %v183 = vsel %vm182, %v180, %v177
  %v184 = vadd.f32 %v174, %v183
  %v185 = vadd.f32 %v173, 1.0
  %v186 = vrcp.pop %v185
  %vm187 = vcmp.ge.f32.partialorder %v144, 0.0
  %v188 = vmul.f32 %v173, %v186
  %v189 = vsel %vm187, %v186, %v188
  %v190 = vsel %vm169, %v184, %v189
  %v191 = vsel %vm165, %v144, %v190
  %193 = vrot.lane.b32.xlu0 %v191, 104
  %v194 = vpop.permute.xlu0 %193
  %v196 = vadd.f32 %v191, %v194
  %197 = vrot.lane.b32.xlu0 %v191, 80
  %v198 = vpop.permute.xlu0 %197
  %v200 = vadd.f32 %v196, %v198
  %v201 = vmul.f32 %v200, 0.33333334
  %v202 = vsel %vm149, %v200, %v201
  %vm203 = vcmask 195584
  %204 = vst.msk [vmem:[%s2] sm:$0xff] %vm203, %v202
  // Predicated region
  $region10: #{ensemble_forward.1} parent=0 // pred_check
    _
  $region11: #{ensemble_forward.1} parent=0 // pred_check_branch
    %206 = sbr.rel (0) target = $region13
  $region12: #{ensemble_forward.1} parent=0 // pred_region
    _
  $region13: #{ensemble_forward.1} parent=0 // pred_fallthru
    _
  // Predicated region
  $region14: #{ensemble_forward.1} parent=0 // pred_check
    _
  $region15: #{ensemble_forward.1} parent=0 // pred_check_branch
    %208 = sbr.rel (0) target = $region17
  $region16: #{ensemble_forward.1} parent=0 // pred_region
    _
  $region17: #{ensemble_forward.1} parent=0 // pred_fallthru
    _

</llo_original>
